<compile_context>
chip_gen: v7x
topology: tpu7x:2x2x1
jax: 0.10.0
libtpu: 0.0.40
codegen_flags: <defaults>
</compile_context>

<pallas_src>
import jax
import jax.numpy as jnp
from jax.experimental import pallas as pl
from jax.experimental.pallas import tpu as pltpu

_CHUNK_BYTES = 32 * 1024 * 1024   # target size of each HBM->HBM DMA chunk
_MAX_CHUNKS = 8                   # cap on outstanding DMAs in the copy path


# ---------------------------------------------------------------------------
# Primary path: aliased, zero-DMA identity.
# ---------------------------------------------------------------------------
def _touch_kernel(x_ref, o_ref):
    # Output aliases the input buffer, so the data is already in place.
    # touch() pins a read/write dependency on the aliased output without
    # moving a single byte (no vld/vst, no DMA).
    del x_ref
    pltpu.touch(o_ref)


def _aliased_identity(x: jax.Array) -> jax.Array:
    return pl.pallas_call(
        _touch_kernel,
        out_shape=jax.ShapeDtypeStruct(x.shape, x.dtype),
        in_specs=[pl.BlockSpec(memory_space=pl.ANY)],
        out_specs=pl.BlockSpec(memory_space=pl.ANY),
        input_output_aliases={0: 0},
        cost_estimate=pl.CostEstimate(
            flops=0, transcendentals=0, bytes_accessed=0
        ),
    )(x)


# ---------------------------------------------------------------------------
# Fallback path: real copy as direct HBM->HBM chunked DMA (no VMEM hop).
# ---------------------------------------------------------------------------
def _choose_cols(total: int) -> int:
    """Largest lane-dense width (multiple of 128) evenly dividing `total`."""
    for c in (1024, 512, 256, 128):
        if total % c == 0:
            return c
    # Degenerate layout is fine here: the copy is pure HBM->HBM DMA, so there
    # is no VMEM tile and no (8, 128) constraint to satisfy.
    return total


def _row_chunks(rows: int, cols: int, itemsize: int):
    """Static (start, num_rows) chunks of ~_CHUNK_BYTES, at most _MAX_CHUNKS."""
    nbytes = rows * cols * itemsize
    row_bytes = max(1, cols * itemsize)
    target = max(_CHUNK_BYTES, -(-nbytes // _MAX_CHUNKS))
    chunk_rows = max(1, target // row_bytes)
    chunks = []
    r = 0
    while r < rows:
        n = min(chunk_rows, rows - r)
        chunks.append((r, n))
        r += n
    return tuple(chunks)


def _make_dma_copy_kernel(chunks):
    def kernel(x_ref, o_ref, sem):
        # Put several HBM->HBM DMAs in flight, then drain them.
        for i, (r0, rn) in enumerate(chunks):
            pltpu.make_async_copy(
                x_ref.at[pl.ds(r0, rn)], o_ref.at[pl.ds(r0, rn)], sem.at[i]
            ).start()
        for i, (r0, rn) in enumerate(chunks):
            pltpu.make_async_copy(
                x_ref.at[pl.ds(r0, rn)], o_ref.at[pl.ds(r0, rn)], sem.at[i]
            ).wait()

    return kernel


def _hbm_copy(x: jax.Array) -> jax.Array:
    """Identity as a real copy: chunked HBM->HBM DMA, no VMEM buffers."""
    total = int(x.size)
    cols = _choose_cols(total)
    rows = total // cols
    x2 = x.reshape(rows, cols)
    chunks = _row_chunks(rows, cols, x2.dtype.itemsize)
    nbytes = total * x2.dtype.itemsize
    y2 = pl.pallas_call(
        _make_dma_copy_kernel(chunks),
        out_shape=jax.ShapeDtypeStruct((rows, cols), x2.dtype),
        in_specs=[pl.BlockSpec(memory_space=pl.ANY)],
        out_specs=pl.BlockSpec(memory_space=pl.ANY),
        scratch_shapes=[pltpu.SemaphoreType.DMA((len(chunks),))],
        compiler_params=pltpu.CompilerParams(has_side_effects=True),
        cost_estimate=pl.CostEstimate(
            flops=0, transcendentals=0, bytes_accessed=2 * nbytes
        ),
    )(x2)
    return y2.reshape(x.shape)


# ---------------------------------------------------------------------------
# Public forward.
# ---------------------------------------------------------------------------
def savis_forward(x: jax.Array) -> jax.Array:
    """SAVIS.forward(x) == x, as a zero-DMA aliased Pallas TPU kernel."""
    if x.size == 0:
        return x  # nothing to move
    try:
        return _aliased_identity(x)
    except Exception:
        # Defensive fallback: if the aliased touch-only kernel cannot be
        # lowered on this toolchain, do a real copy as direct HBM->HBM DMA.
        return _hbm_copy(x)


if __name__ == "__main__":
    key = jax.random.PRNGKey(0)
    x = jax.random.normal(key, (2, 4, 16, 16), dtype=jnp.float32)

    y = savis_forward(x)
    jax.block_until_ready(y)

    assert y.shape == x.shape and y.dtype == x.dtype
    assert bool(jnp.all(y == x))
    print("KERNEL_OK")
</pallas_src>

<mosaic_0001>
module attributes {stable_mosaic.version = 11 : i64} {
  func.func @_touch_kernel(%arg0: memref<2x4x16x16xf32, #tpu.memory_space<any>>, %arg1: memref<2x4x16x16xf32, #tpu.memory_space<any>>) attributes {dimension_semantics = [], scalar_prefetch = 0 : i64, scratch_operands = 0 : i64, tpu.core_type = #tpu.core_type<tc>} {
    return
  }
}

module attributes {stable_mosaic.version = 11 : i64} {
  func.func @kernel(%arg0: memref<2x1024xf32, #tpu.memory_space<any>>, %arg1: memref<2x1024xf32, #tpu.memory_space<any>>, %arg2: memref<1x!tpu.dma_semaphore, #tpu.memory_space<semaphore_mem>>) attributes {dimension_semantics = [], scalar_prefetch = 0 : i64, scratch_operands = 1 : i64, tpu.core_type = #tpu.core_type<tc>} {
    %c0_i32 = arith.constant 0 : i32
    %c0_i32_0 = arith.constant 0 : i32
    %c0_i32_1 = arith.constant 0 : i32
    %0 = tpu.memref_slice %arg0[%c0_i32_0, %c0_i32_1] : memref<2x1024xf32, #tpu.memory_space<any>> -> memref<2x1024xf32, #tpu.memory_space<any>>
    %c0_i32_2 = arith.constant 0 : i32
    %c0_i32_3 = arith.constant 0 : i32
    %1 = tpu.memref_slice %arg1[%c0_i32_2, %c0_i32_3] : memref<2x1024xf32, #tpu.memory_space<any>> -> memref<2x1024xf32, #tpu.memory_space<any>>
    %2 = tpu.memref_slice %arg2[%c0_i32] : memref<1x!tpu.dma_semaphore, #tpu.memory_space<semaphore_mem>> -> memref<1x!tpu.dma_semaphore, #tpu.memory_space<semaphore_mem>>
    %3 = tpu.memref_squeeze %2 : memref<1x!tpu.dma_semaphore, #tpu.memory_space<semaphore_mem>> -> memref<!tpu.dma_semaphore, #tpu.memory_space<semaphore_mem>>
    tpu.enqueue_dma source(%0 : memref<2x1024xf32, #tpu.memory_space<any>>) target(%1 : memref<2x1024xf32, #tpu.memory_space<any>>) target_semaphore(%3 : memref<!tpu.dma_semaphore, #tpu.memory_space<semaphore_mem>>)
    %c0_i32_4 = arith.constant 0 : i32
    %c0_i32_5 = arith.constant 0 : i32
    %c0_i32_6 = arith.constant 0 : i32
    %4 = tpu.memref_slice %arg0[%c0_i32_5, %c0_i32_6] : memref<2x1024xf32, #tpu.memory_space<any>> -> memref<2x1024xf32, #tpu.memory_space<any>>
    %c0_i32_7 = arith.constant 0 : i32
    %c0_i32_8 = arith.constant 0 : i32
    %5 = tpu.memref_slice %arg1[%c0_i32_7, %c0_i32_8] : memref<2x1024xf32, #tpu.memory_space<any>> -> memref<2x1024xf32, #tpu.memory_space<any>>
    %6 = tpu.memref_slice %arg2[%c0_i32_4] : memref<1x!tpu.dma_semaphore, #tpu.memory_space<semaphore_mem>> -> memref<1x!tpu.dma_semaphore, #tpu.memory_space<semaphore_mem>>
    %7 = tpu.memref_squeeze %6 : memref<1x!tpu.dma_semaphore, #tpu.memory_space<semaphore_mem>> -> memref<!tpu.dma_semaphore, #tpu.memory_space<semaphore_mem>>
    tpu.wait_dma2 semaphore(%7 : memref<!tpu.dma_semaphore, #tpu.memory_space<semaphore_mem>>) src(%4 : memref<2x1024xf32, #tpu.memory_space<any>>) dst(%5 : memref<2x1024xf32, #tpu.memory_space<any>>)
    return
  }
}

</mosaic_0001>

<llo_original>
// kernel: tpu_custom_call.1
$region0: #{tpu_custom_call.1}
  #allocation0 [shape = 'u32[]', space=smem, size = 0x4, offset = 0x4, fixed_abs, tag = 'smem constant byte address 0x4 - core index']
  #allocation1 [shape = 'u32[144,128]{1,0:T(1,128)}', space=vmem, size = 0x12000, scoped, tag = 'internal scratch']
  %s0 = inlined_call_operand.hbm [shape: f32[2,4,16,16], index: 0, kind: input, shape index: {}, may-alias: {0,1}]
  %s1 = inlined_call_operand.hbm [shape: f32[2,4,16,16], index: 1, kind: output, shape index: {}, may-alias: {0,1}]
  %s2 = sld [smem:[#allocation0]]
  $region2: #{tpu_custom_call.1} parent=0
    _
  %s4 = ssub.s32 1, %s2
  %s5 = scalar_select 0, %s4, %s2

// kernel: tpu_custom_call.1
$region0: #{tpu_custom_call.1}
  #allocation0 [shape = 'u32[]', space=smem, size = 0x4, offset = 0x4, fixed_abs, tag = 'smem constant byte address 0x4 - core index']
  #allocation1 [shape = 'u32[144,128]{1,0:T(1,128)}', space=vmem, size = 0x12000, scoped, tag = 'internal scratch']
  #allocation2 [shape = 's32[1]{0}', space=sflag, size = 0x4, scoped, tag = 'scratch operand']
  #allocation3 [shape = 's32[]', space=sflag, size = 0x4, offset = 0, fixed_abs, tag = 'sflag constant byte address 0x0 - dummy sync flag']
  #allocation4 [shape = 'u32[0]{0}', space=smem, size = 0, offset = 0, fixed_abs, tag = 'smem constant byte address 0x0 - null']
  %s0 = inlined_call_operand.hbm [shape: f32[2,1024], index: 0, kind: input, shape index: {}]
  %s1 = inlined_call_operand.hbm [shape: f32[2,1024], index: 1, kind: output, shape index: {}]
  %s2 = sld [smem:[#allocation0]]
  $region2: #{tpu_custom_call.1} parent=0
    _
  %s4 = ssub.s32 1, %s2
  %s5 = scalar_select 0, %s4, %s2
  %s7 = sshll.u32 1, 14
  %s8 = sxor.u32 4294967295, %s7
  %s11 = sshll.u32 3, 24
  %s12 = sxor.u32 4294967295, %s11
  %s13 = sand.u32 0, %s12
  %s15 = sor.u32 %s13, 0
  %18 = dma.general %s0, 256, %s1, [#allocation2], [#allocation3], [#allocation4], %s15, 0
  %s19 = smul.u32 2, 1
  %s20 = smul.u32 %s19, 8
  %s21 = sshll.u32 %s20, 4
  %22 = dma.done [#allocation2], %s21
  %23 = vsyncmov [#allocation2]
  %s24 = vpop.sfrf %23
  %p25 = scmp.eq.s32.totalorder %s24, 0
  %p26 = pneg %p25
  %28 = shalt.err (%p26)

</llo_original>
